<compile_context>
chip_gen: v5e
topology: v5e:2x2
jax: 0.10.0
libtpu: 0.0.40
codegen_flags: <defaults>
</compile_context>

<pallas_src>
import jax
import jax.numpy as jnp
from jax import lax
from jax.experimental import pallas as pl
from jax.experimental.pallas import tpu as pltpu


# ---------------------------------------------------------------------------
# Generic tiled linear kernel:  out = x @ w + b   (f32 accumulation)
# Used for the hoisted input projection (E -> 4H) and output projection
# (H -> V). Both grid axes are "parallel" (usable by both v7x TensorCores /
# megacore on v6e).
# ---------------------------------------------------------------------------
def _linear_kernel(x_ref, w_ref, b_ref, o_ref):
    acc = jnp.dot(x_ref[...], w_ref[...], preferred_element_type=jnp.float32)
    o_ref[...] = (acc + b_ref[...]).astype(o_ref.dtype)


def _linear_pallas(x, w_t, b, *, matmul_dtype):
    """x: (M, K), w_t: (K, N), b: (N,)  ->  (M, N) float32."""
    M, K = x.shape
    N = w_t.shape[1]
    # Tile M / N when they are large multiples of MXU-friendly sizes,
    # otherwise fall back to full-dim blocks (always a legal block shape).
    tm = 256 if M % 256 == 0 else M
    tn = 512 if N % 512 == 0 else N
    grid = (M // tm, N // tn)

    x = x.astype(matmul_dtype)
    w_t = w_t.astype(matmul_dtype)
    b2 = b.reshape(1, N).astype(jnp.float32)

    return pl.pallas_call(
        _linear_kernel,
        out_shape=jax.ShapeDtypeStruct((M, N), jnp.float32),
        grid=grid,
        in_specs=[
            pl.BlockSpec((tm, K), lambda i, j: (i, 0)),
            pl.BlockSpec((K, tn), lambda i, j: (0, j)),
            pl.BlockSpec((1, tn), lambda i, j: (0, j)),
        ],
        out_specs=pl.BlockSpec((tm, tn), lambda i, j: (i, j)),
        compiler_params=pltpu.CompilerParams(
            dimension_semantics=("parallel", "parallel")),
    )(x, w_t, b2)


# ---------------------------------------------------------------------------
# Recurrent LSTM kernel: one grid step = one chunk of timesteps.
# Only the hidden->gates matmul lives on the serial critical path.
# ---------------------------------------------------------------------------
def _lstm_recurrence_kernel(pg_ref, whh_ref, h_out_ref, h_scr, c_scr):
    """
    pg_ref   : (T_CHUNK, B, 4H) f32  pre-gates = x_t @ W_ih^T + (b_ih + b_hh)
    whh_ref  : (H, 4H)               hidden->gates weights (transposed)
    h_out_ref: (T_CHUNK, B, H)  f32  hidden state per timestep
    h_scr    : (B, H) f32            carried hidden state (persists over grid)
    c_scr    : (B, H) f32            carried cell state   (persists over grid)
    """
    @pl.when(pl.program_id(0) == 0)
    def _():
        h_scr[...] = jnp.zeros_like(h_scr)
        c_scr[...] = jnp.zeros_like(c_scr)

    whh = whh_ref[...]                       # hoisted load of the only weight
    H = h_scr.shape[1]
    n_steps = pg_ref.shape[0]                # static chunk length

    def step(s, carry):
        h, c = carry
        gates = pg_ref[s] + jnp.dot(h.astype(whh.dtype), whh,
                                    preferred_element_type=jnp.float32)
        # PyTorch gate order: i, f, g, o. (Slices are lane-aligned whenever
        # H is a multiple of 128; for the small demo H this is a minor cost.)
        i_g = jax.nn.sigmoid(gates[:, 0 * H:1 * H])
        f_g = jax.nn.sigmoid(gates[:, 1 * H:2 * H])
        g_g = jnp.tanh(gates[:, 2 * H:3 * H])
        o_g = jax.nn.sigmoid(gates[:, 3 * H:4 * H])
        c = f_g * c + i_g * g_g
        h = o_g * jnp.tanh(c)
        h_out_ref[s] = h
        return h, c

    h, c = lax.fori_loop(0, n_steps, step, (h_scr[...], c_scr[...]),
                         unroll=True)
    h_scr[...] = h
    c_scr[...] = c


# ---------------------------------------------------------------------------
# Forward pass (matches PyTorch DecoderRNN.forward semantics)
# ---------------------------------------------------------------------------
def decoder_rnn_forward(features, captions, params, *,
                        matmul_dtype=jnp.bfloat16, t_chunk=8):
    """
    features: (B, E) float32
    captions: (B, Tc) int32
    returns : (B, Tc, V) float32   (1 feature step + (Tc - 1) caption tokens)
    """
    embed_table = params["embed"]          # (V, E)
    w_ih = params["w_ih"]                  # (4H, E)
    w_hh = params["w_hh"]                  # (4H, H)
    b_ih = params["b_ih"]                  # (4H,)
    b_hh = params["b_hh"]                  # (4H,)
    w_out = params["w_out"]                # (V, H)
    b_out = params["b_out"]                # (V,)

    B, E = features.shape
    V, H = w_out.shape

    # --- glue: embedding lookup, built directly time-major (no transpose) ---
    cap_ids_t = captions[:, :-1].T                              # (Tc-1, B)
    cap_emb = jnp.take(embed_table, cap_ids_t, axis=0)          # (Tc-1, B, E)
    x_tbe = jnp.concatenate(
        [features[None].astype(jnp.float32), cap_emb.astype(jnp.float32)],
        axis=0)                                                 # (T, B, E)
    T = x_tbe.shape[0]

    # --- hoisted input projection: one big matmul, biases folded in ---
    pre_gates = _linear_pallas(
        x_tbe.reshape(T * B, E), w_ih.T, b_ih + b_hh,
        matmul_dtype=matmul_dtype).reshape(T, B, 4 * H)         # f32

    # Pad T so the serial grid sees fixed-size timestep chunks.
    t_chunk = min(t_chunk, max(T, 1))
    T_pad = pl.cdiv(T, t_chunk) * t_chunk
    if T_pad != T:
        pre_gates = jnp.pad(pre_gates, ((0, T_pad - T), (0, 0), (0, 0)))

    # --- serial recurrence: only h @ W_hh^T per step inside the kernel ---
    h_tbh = pl.pallas_call(
        _lstm_recurrence_kernel,
        out_shape=jax.ShapeDtypeStruct((T_pad, B, H), jnp.float32),
        grid_spec=pltpu.PrefetchScalarGridSpec(
            num_scalar_prefetch=0,
            grid=(T_pad // t_chunk,),
            in_specs=[
                pl.BlockSpec((t_chunk, B, 4 * H), lambda t: (t, 0, 0)),
                pl.BlockSpec((H, 4 * H), lambda t: (0, 0)),
            ],
            out_specs=pl.BlockSpec((t_chunk, B, H), lambda t: (t, 0, 0)),
            scratch_shapes=[
                pltpu.VMEM((B, H), jnp.float32),                # h carry
                pltpu.VMEM((B, H), jnp.float32),                # c carry
            ],
        ),
        compiler_params=pltpu.CompilerParams(
            dimension_semantics=("arbitrary",)),   # time axis must stay serial
    )(pre_gates, w_hh.T.astype(matmul_dtype))

    # --- hoisted output projection: reorder the SMALL (T,B,H) tensor, then one
    # grid-parallel matmul emits batch-first (B,T,V) logits directly. ---
    h_bth = jnp.transpose(h_tbh[:T], (1, 0, 2))                 # (B, T, H)
    logits = _linear_pallas(
        h_bth.reshape(B * T, H), w_out.T, b_out,
        matmul_dtype=matmul_dtype).reshape(B, T, V)
    return logits


# ---------------------------------------------------------------------------
# Pure-JAX f32 reference (lax.scan) matching PyTorch LSTM semantics
# ---------------------------------------------------------------------------
def _reference_forward(features, captions, params):
    embed_table = params["embed"]
    w_ih, w_hh = params["w_ih"], params["w_hh"]
    b = params["b_ih"] + params["b_hh"]
    w_out, b_out = params["w_out"], params["b_out"]
    H = w_hh.shape[1]

    cap_emb = jnp.take(embed_table, captions[:, :-1], axis=0)
    x = jnp.concatenate([features[:, None, :], cap_emb], axis=1)   # (B, T, E)
    B = x.shape[0]

    def step(carry, x_t):
        h, c = carry
        g = x_t @ w_ih.T + h @ w_hh.T + b
        i = jax.nn.sigmoid(g[:, 0 * H:1 * H])
        f = jax.nn.sigmoid(g[:, 1 * H:2 * H])
        gg = jnp.tanh(g[:, 2 * H:3 * H])
        o = jax.nn.sigmoid(g[:, 3 * H:4 * H])
        c = f * c + i * gg
        h = o * jnp.tanh(c)
        return (h, c), h @ w_out.T + b_out

    init = (jnp.zeros((B, H), jnp.float32), jnp.zeros((B, H), jnp.float32))
    _, outs = lax.scan(step, init, jnp.transpose(x, (1, 0, 2)))
    return jnp.transpose(outs, (1, 0, 2))


def init_params(key, embed_size, hidden_size, vocab_size):
    ks = jax.random.split(key, 7)
    s = 0.1
    return {
        "embed": s * jax.random.normal(ks[0], (vocab_size, embed_size), jnp.float32),
        "w_ih": s * jax.random.normal(ks[1], (4 * hidden_size, embed_size), jnp.float32),
        "w_hh": s * jax.random.normal(ks[2], (4 * hidden_size, hidden_size), jnp.float32),
        "b_ih": s * jax.random.normal(ks[3], (4 * hidden_size,), jnp.float32),
        "b_hh": s * jax.random.normal(ks[4], (4 * hidden_size,), jnp.float32),
        "w_out": s * jax.random.normal(ks[5], (vocab_size, hidden_size), jnp.float32),
        "b_out": s * jax.random.normal(ks[6], (vocab_size,), jnp.float32),
    }


if __name__ == "__main__":
    # TODO(synk): DecoderRNN.sample (greedy argmax decode loop with host-side
    # .item() readback and data-dependent stopping) is host control flow; only
    # forward() is implemented with Pallas kernels.
    B, E, H, V, Tc = 2, 32, 32, 128, 8   # batch, embed, hidden, vocab, caption len

    key = jax.random.PRNGKey(0)
    k_par, k_feat, k_cap = jax.random.split(key, 3)
    params = init_params(k_par, E, H, V)
    features = jax.random.normal(k_feat, (B, E), jnp.float32)
    captions = jax.random.randint(k_cap, (B, Tc), 0, V, jnp.int32)

    ref = jax.block_until_ready(_reference_forward(features, captions, params))

    # f32 matmul path: faithful to the f32 PyTorch semantics, tight tolerance.
    out_f32 = jax.block_until_ready(
        decoder_rnn_forward(features, captions, params,
                            matmul_dtype=jnp.float32))
    assert out_f32.shape == (B, Tc, V), out_f32.shape
    assert jnp.allclose(out_f32, ref, rtol=1e-3, atol=1e-3), \
        float(jnp.max(jnp.abs(out_f32 - ref)))

    # bf16 matmul operands (MXU-native) with f32 accumulation: tolerance
    # widened to cover bf16 operand rounding over the T-step recurrence.
    out_bf16 = jax.block_until_ready(
        decoder_rnn_forward(features, captions, params,
                            matmul_dtype=jnp.bfloat16))
    assert out_bf16.shape == (B, Tc, V), out_bf16.shape
    assert jnp.allclose(out_bf16, ref, rtol=3e-2, atol=3e-2), \
        float(jnp.max(jnp.abs(out_bf16 - ref)))

    print("KERNEL_OK")
</pallas_src>

<mosaic_0001>
module attributes {stable_mosaic.version = 11 : i64} {
  func.func @_linear_kernel(%arg0: i32, %arg1: i32, %arg2: memref<16x32xf32, #tpu.memory_space<vmem>>, %arg3: memref<32x128xf32, #tpu.memory_space<vmem>>, %arg4: memref<1x128xf32, #tpu.memory_space<vmem>>, %arg5: memref<16x128xf32, #tpu.memory_space<vmem>>) attributes {dimension_semantics = [#tpu.dimension_semantics<parallel>, #tpu.dimension_semantics<parallel>], iteration_bounds = array<i64: 1, 1>, scalar_prefetch = 0 : i64, scratch_operands = 0 : i64, tpu.core_type = #tpu.core_type<tc>, window_params = [{transform_indices = @transform_0, window_bounds = array<i64: 16, 32>}, {transform_indices = @transform_1, window_bounds = array<i64: 32, 128>}, {transform_indices = @transform_2, window_bounds = array<i64: 1, 128>}, {transform_indices = @transform_3, window_bounds = array<i64: 16, 128>}]} {
    %c0 = arith.constant 0 : index
    %c0_0 = arith.constant 0 : index
    %0 = vector.load %arg2[%c0, %c0_0] : memref<16x32xf32, #tpu.memory_space<vmem>>, vector<16x32xf32>
    %c0_1 = arith.constant 0 : index
    %c0_2 = arith.constant 0 : index
    %1 = vector.load %arg3[%c0_1, %c0_2] : memref<32x128xf32, #tpu.memory_space<vmem>>, vector<32x128xf32>
    %cst = arith.constant dense<0.000000e+00> : vector<16x128xf32>
    %2 = tpu.matmul %0, %1, %cst {dimension_numbers = #tpu.dot_dimension_numbers<[1], [0], [0], [1], [0, 0, 1, 1], [], []>} : vector<16x32xf32>, vector<32x128xf32>, vector<16x128xf32> -> vector<16x128xf32>
    %c0_3 = arith.constant 0 : index
    %c0_4 = arith.constant 0 : index
    %3 = vector.load %arg4[%c0_3, %c0_4] : memref<1x128xf32, #tpu.memory_space<vmem>>, vector<1x128xf32>
    %4 = vector.broadcast %3 : vector<1x128xf32> to vector<16x128xf32>
    %5 = arith.addf %2, %4 : vector<16x128xf32>
    %c0_5 = arith.constant 0 : index
    %c0_6 = arith.constant 0 : index
    %6 = vector.load %arg5[%c0_5, %c0_6] : memref<16x128xf32, #tpu.memory_space<vmem>>, vector<16x128xf32>
    tpu.vector_store %arg5[%c0_5, %c0_6], %5 {strides = array<i32>} : memref<16x128xf32, #tpu.memory_space<vmem>>, vector<16x128xf32>,
    return
  }
  func.func @transform_0(%arg0: i32, %arg1: i32) -> (i32, i32) {
    %c0_i32 = arith.constant 0 : i32
    %c0_i32_0 = arith.constant 0 : i32
    return %arg0, %c0_i32 : i32, i32
  }
  func.func @transform_1(%arg0: i32, %arg1: i32) -> (i32, i32) {
    %c0_i32 = arith.constant 0 : i32
    %c0_i32_0 = arith.constant 0 : i32
    return %c0_i32, %arg1 : i32, i32
  }
  func.func @transform_2(%arg0: i32, %arg1: i32) -> (i32, i32) {
    %c0_i32 = arith.constant 0 : i32
    %c0_i32_0 = arith.constant 0 : i32
    return %c0_i32, %arg1 : i32, i32
  }
  func.func @transform_3(%arg0: i32, %arg1: i32) -> (i32, i32) {
    %c0_i32 = arith.constant 0 : i32
    return %arg0, %arg1 : i32, i32
  }
}

</mosaic_0001>

<llo_original>
// kernel: tpu_custom_call.1
$region0: #{tpu_custom_call.1}
  #allocation0 [shape = 'u32[]', space=smem, size = 0x4, offset = 0x4, fixed_abs, tag = 'smem constant byte address 0x4 - core index']
  #allocation1 [shape = 'u32[72,128]{1,0:T(1,128)}', space=vmem, size = 0x9000, scoped, tag = 'internal scratch']
  %s0 = inlined_call_operand.hbm [shape: f32[16,32], index: 0, kind: input, shape index: {}]
  %s1 = inlined_call_operand.hbm [shape: f32[32,128], index: 1, kind: input, shape index: {}]
  %s2 = inlined_call_operand.vmem [shape: f32[1,128], index: 2, kind: input, shape index: {}]
  %s3 = inlined_call_operand.hbm [shape: f32[16,128], index: 3, kind: output, shape index: {}]
  %s4 = sld [smem:[#allocation0]]
  $region30: #{tpu_custom_call.1} parent=0
    _
  %s6 = ssub.s32 1, %s4
  %s7 = scalar_select 0, %s6, %s4
  $region1: #{tpu_custom_call.1} parent=0
    #allocation2 [shape = 'u8[8192]{0}', space=vmem, size = 0x2000, scoped, tag = 'input window, operand 0, single buffered']
    #allocation3 [shape = 's32[1]{0}', space=sflag, size = 0x4, scoped, tag = 'scoped memory for tpu_custom_call.1']
    #allocation4 [shape = 's32[1]{0}', space=sflag, size = 0x4, scoped, tag = 'scoped memory for tpu_custom_call.1']
    #allocation5 [shape = 'u8[16384]{0}', space=vmem, size = 0x4000, scoped, tag = 'input window, operand 1, single buffered']
    #allocation6 [shape = 's32[1]{0}', space=sflag, size = 0x4, scoped, tag = 'scoped memory for tpu_custom_call.1']
    #allocation7 [shape = 'u8[8192]{0}', space=vmem, size = 0x2000, scoped, tag = 'output window, operand 0, single buffered']
    %8 = vsyncpa [#allocation3], 0
    %9 = vsyncpa [#allocation6], 0
    %10 = vsyncpa [#allocation4], 0
    // Predicated region
    $region2: #{tpu_custom_call.1} parent=1 // pred_check
      _
    $region3: #{tpu_custom_call.1} parent=1 // pred_check_branch
      %12 = sbr.rel (0) target = $region5
    $region4: #{tpu_custom_call.1} parent=1 // pred_region
      %14 = vsyncadd [#allocation3], 0
      %s15 = sshll.u32 %s0, 4
      %s16 = int_to_ptr.hbm [resolvable:$true] %s15
      %s17 = sshll.u32 [#allocation2], 4
      %s18 = int_to_ptr.vmem [resolvable:$true] %s17
      %23 = dma.hbm_to_vmem [thread:$0]  %s16, 256, %s18, [#allocation3], 128, 128, 8
    $region5: #{tpu_custom_call.1} parent=1 // pred_fallthru
      _
    // Predicated region
    $region6: #{tpu_custom_call.1} parent=1 // pred_check
      _
    $region7: #{tpu_custom_call.1} parent=1 // pred_check_branch
      %25 = sbr.rel (0) target = $region9
    $region8: #{tpu_custom_call.1} parent=1 // pred_region
      %27 = vsyncadd [#allocation6], 0
      %s28 = sshll.u32 %s1, 4
      %s29 = int_to_ptr.hbm [resolvable:$true] %s28
      %s30 = sshll.u32 [#allocation5], 4
      %s31 = int_to_ptr.vmem [resolvable:$true] %s30
      %36 = dma.hbm_to_vmem [thread:$0]  %s29, 512, %s31, [#allocation6], 128, 128, 8
    $region9: #{tpu_custom_call.1} parent=1 // pred_fallthru
      _
    // Predicated region
    $region10: #{tpu_custom_call.1} parent=1 // pred_check
      _
    $region11: #{tpu_custom_call.1} parent=1 // pred_check_branch
      %38 = sbr.rel (0) target = $region13
    $region12: #{tpu_custom_call.1} parent=1 // pred_region
      _
    $region13: #{tpu_custom_call.1} parent=1 // pred_fallthru
      _
    // Predicated region
    $region14: #{tpu_custom_call.1} parent=1 // pred_check
      _
    $region15: #{tpu_custom_call.1} parent=1 // pred_check_branch
      %40 = sbr.rel (0) target = $region17
    $region16: #{tpu_custom_call.1} parent=1 // pred_region
      %42 = dma.done [#allocation3], 256
    $region17: #{tpu_custom_call.1} parent=1 // pred_fallthru
      _
    // Predicated region
    $region18: #{tpu_custom_call.1} parent=1 // pred_check
      _
    $region19: #{tpu_custom_call.1} parent=1 // pred_check_branch
      %44 = sbr.rel (0) target = $region21
    $region20: #{tpu_custom_call.1} parent=1 // pred_region
      %46 = dma.done [#allocation6], 512
    $region21: #{tpu_custom_call.1} parent=1 // pred_fallthru
      _
    %v47 = vld [vmem:[#allocation2] sm:$0xff]
    %v48 = vld [vmem:[#allocation2 + $0x8] sm:$0xff]
    %v49 = vld [vmem:[#allocation5] sm:$0xff]
    %v50 = vld [vmem:[#allocation5 + $0x8] sm:$0xff]
    %v51 = vld [vmem:[#allocation5 + $0x10] sm:$0xff]
    %v52 = vld [vmem:[#allocation5 + $0x18] sm:$0xff]
    %v53 = vld [vmem:[%s2] sm:$0x1]
    %v55 = vperm.slane %v53, 0
    %vm57 = vcmask 261120
    %v59 = vsel %vm57, %v47, 0
    %v62 = vsel %vm57, %v48, 0
    %64 = vmatpush.msra.mxu0 0.0
    %65 = vmatpush.msra.mxu0 0.0
    %66 = vmatpush.msra.mxu0 0.0
    %67 = vmatpush.msra.mxu0 0.0
    %68 = vmatpush.msra.mxu0 0.0
    %69 = vmatpush.msra.mxu0 0.0
    %70 = vmatpush.msra.mxu0 0.0
    %71 = vmatpush.msra.mxu0 0.0
    %72 = vmatpush.msra.mxu0 0.0
    %73 = vmatpush.msra.mxu0 0.0
    %74 = vmatpush.msra.mxu0 0.0
    %75 = vmatpush.msra.mxu0 0.0
    %76 = vmatpush.msra.mxu0 %v52
    %77 = vmatpush.msra.mxu0 %v51
    %78 = vmatpush.msra.mxu0 %v50
    %79 = vmatpush.msra.mxu0 %v49
    %80 = vmatmul.f32.gmra.mxu0 %v59
    %v81 = vpop.f32.mrf.mxu0
    %v82 = vadd.f32 %v55, %v81
    %83 = vmatmul.f32.gmra.mxu0 %v62
    %v84 = vpop.f32.mrf.mxu0
    %v85 = vadd.f32 %v55, %v84
    %86 = vdwg.mxu0
    %87 = vst [vmem:[#allocation7] sm:$0xff] %v82
    %88 = vst [vmem:[#allocation7 + $0x8] sm:$0xff] %v85
    // Predicated region
    $region22: #{tpu_custom_call.1} parent=1 // pred_check
      _
    $region23: #{tpu_custom_call.1} parent=1 // pred_check_branch
      %90 = sbr.rel (0) target = $region25
    $region24: #{tpu_custom_call.1} parent=1 // pred_region
      %92 = vsyncadd [#allocation4], 0
      %s93 = sshll.u32 [#allocation7], 4
      %s94 = int_to_ptr.vmem [resolvable:$true] %s93
      %s95 = sshll.u32 %s3, 4
      %s96 = int_to_ptr.hbm [resolvable:$true] %s95
      %101 = dma.vmem_to_hbm [thread:$0]  %s94, 256, %s96, [#allocation4], 128, 128, 8
    $region25: #{tpu_custom_call.1} parent=1 // pred_fallthru
      _
    // Predicated region
    $region26: #{tpu_custom_call.1} parent=1 // pred_check
      _
    $region27: #{tpu_custom_call.1} parent=1 // pred_check_branch
      %103 = sbr.rel (0) target = $region29
    $region28: #{tpu_custom_call.1} parent=1 // pred_region
      %105 = dma.done [#allocation4], 256
    $region29: #{tpu_custom_call.1} parent=1 // pred_fallthru
      _
    %106 = vsyncpa [#allocation3], 1
    %107 = vsyncpa [#allocation6], 1
    %108 = vsyncpa [#allocation4], 1

</llo_original>
